<compile_context>
chip_gen: v7x
topology: tpu7x:2x2x1
jax: 0.10.0
libtpu: 0.0.40
codegen_flags: <defaults>
</compile_context>

<pallas_src>
import jax
import jax.numpy as jnp
from jax.experimental import pallas as pl
from jax.experimental.pallas import tpu as pltpu


# ---------------------------------------------------------------------------
# Tile helper: largest multiple of `align` that divides n and is <= target.
# ---------------------------------------------------------------------------
def _pick_tile(n, target, align):
    if n <= target:
        return n
    t = (target // align) * align
    while t >= align:
        if n % t == 0:
            return t
        t -= align
    # TODO(synk): N not divisible by `align` falls back to a full-extent block;
    # pad-and-mask would be needed to keep VMEM-sized tiles for that case.
    return n


# ---------------------------------------------------------------------------
# Pass 2 (with Pass 1 fused): tiled Gram matrix of the normalized rows.
#   o_ref is the f32 accumulator (resident across k); row/col sum-of-squares
#   are accumulated alongside and applied (rsqrt scaling) at the last k step,
#   together with the zero-diagonal mask, in a single store.
# ---------------------------------------------------------------------------
def _gram_kernel(xr_ref, xc_ref, o_ref, ssr_ref, ssc_ref):
    # program_id/num_programs must be read at the top level of the body
    # (not inside pl.when bodies) for both compiled and interpret modes.
    i = pl.program_id(0)
    j = pl.program_id(1)
    k = pl.program_id(2)
    nk = pl.num_programs(2)

    @pl.when(k == 0)
    def _():
        o_ref[...] = jnp.zeros_like(o_ref)
        ssr_ref[...] = jnp.zeros_like(ssr_ref)
        ssc_ref[...] = jnp.zeros_like(ssc_ref)

    a = xr_ref[...]                                     # (tm, tk) bf16/f32
    b = xc_ref[...]                                     # (tn, tk) bf16/f32

    # MXU: o += A @ B.T with f32 accumulation directly into the output block.
    o_ref[...] += jax.lax.dot_general(
        a, b, dimension_numbers=(((1,), (1,)), ((), ())),
        preferred_element_type=jnp.float32)

    # Fused row sum-of-squares (was a separate pass): free VPU/MXU filler
    # under the MXU-bound inner loop.
    af = a.astype(jnp.float32)
    bf = b.astype(jnp.float32)
    ssr_ref[...] += jnp.sum(af * af, axis=1, keepdims=True)          # (tm, 1)
    ones_row = jnp.ones((1, bf.shape[1]), jnp.float32)
    ssc_ref[...] += jax.lax.dot_general(                             # (1, tn)
        ones_row, bf * bf, dimension_numbers=(((1,), (1,)), ((), ())),
        preferred_element_type=jnp.float32)

    @pl.when(k == nk - 1)
    def _():
        tm, tn = o_ref.shape
        # F.normalize(dim=1) on both operands == scale G by
        # 1/max(||x_i||, eps) * 1/max(||x_j||, eps).  rsqrt -> EUP slot.
        inv_r = jax.lax.rsqrt(jnp.maximum(ssr_ref[...], 1e-24))      # (tm, 1)
        inv_c = jax.lax.rsqrt(jnp.maximum(ssc_ref[...], 1e-24))      # (1, tn)
        sim = o_ref[...] * inv_r * inv_c
        # Zero the global diagonal, folded into the single final store.
        rows = i * tm + jax.lax.broadcasted_iota(jnp.int32, (tm, tn), 0)
        cols = j * tn + jax.lax.broadcasted_iota(jnp.int32, (tm, tn), 1)
        o_ref[...] = jnp.where(rows == cols, 0.0, sim)


# ---------------------------------------------------------------------------
# Counting pass for the histogram quantile:
#   counts[b] = #{ sim <= edges[b] } accumulated over the whole matrix.
# ---------------------------------------------------------------------------
def _count_kernel(edges_ref, sim_ref, cnt_ref):
    i = pl.program_id(0)
    j = pl.program_id(1)

    @pl.when(jnp.logical_and(i == 0, j == 0))
    def _():
        cnt_ref[...] = jnp.zeros_like(cnt_ref)

    edges3 = edges_ref[...].reshape(1, 1, -1)            # (1, 1, B)
    s = sim_ref[...]                                     # (tr, tc) f32
    nb = edges3.shape[-1]
    tr = s.shape[0]
    chunk = 8                                            # keep (8, tc, B) small

    def count_rows(rows):
        cmp = (rows[:, :, None] <= edges3).astype(jnp.int32)          # (r,tc,B)
        return jnp.sum(jnp.sum(cmp, axis=0), axis=0, keepdims=True)   # (1, B)

    nfull = tr // chunk

    def body(r, acc):
        rows = jax.lax.dynamic_slice_in_dim(s, r * chunk, chunk, axis=0)
        return acc + count_rows(rows)

    acc = jax.lax.fori_loop(0, nfull, body, jnp.zeros((1, nb), jnp.int32))
    if tr % chunk:
        acc = acc + count_rows(s[nfull * chunk:, :])
    cnt_ref[...] += acc


def _count_leq(sim_mat, edges_row, tr, tc, vmem_limit):
    """Pallas streaming pass: cumulative counts of sim_mat <= each edge."""
    n = sim_mat.shape[0]
    nb = edges_row.shape[1]
    counts = pl.pallas_call(
        _count_kernel,
        out_shape=jax.ShapeDtypeStruct((1, nb), jnp.int32),
        grid_spec=pltpu.PrefetchScalarGridSpec(
            num_scalar_prefetch=0,
            grid=(n // tr, n // tc),
            in_specs=[
                pl.BlockSpec((1, nb), lambda i, j: (0, 0)),
                pl.BlockSpec((tr, tc), lambda i, j: (i, j)),
            ],
            out_specs=pl.BlockSpec((1, nb), lambda i, j: (0, 0))),
        compiler_params=pltpu.CompilerParams(
            dimension_semantics=("arbitrary", "arbitrary"),
            vmem_limit_bytes=vmem_limit),
    )(edges_row, sim_mat)
    return counts[0]


_COARSE_BINS = 128
_FINE_BINS = 128


def _order_stat_from_counts(edges, counts, t):
    """Estimate the t-th smallest value (1-based) from cumulative counts by
    locating its bin and linearly interpolating the inverse CDF inside it."""
    nb = counts.shape[0]
    idx = jnp.clip(jnp.searchsorted(counts, t), 1, nb - 1)
    c_lo = counts[idx - 1].astype(jnp.float32)
    c_hi = counts[idx].astype(jnp.float32)
    e_lo = edges[idx - 1]
    e_hi = edges[idx]
    frac = jnp.clip((t.astype(jnp.float32) - c_lo) / jnp.maximum(c_hi - c_lo, 1.0),
                    0.0, 1.0)
    return e_lo + frac * (e_hi - e_lo)


def _approx_quantiles(sim_mat, qs, tr, tc, vmem_limit):
    """Two-level fixed-range counting quantiles of all N^2 entries (linear
    interpolation like torch.quantile) - no O(N^2 log N^2) global sort.
    Cosine similarities are bounded in [-1, 1], so a coarse pass + one refined
    pass gives ~1e-4 resolution."""
    n = sim_mat.shape[0]
    m = n * n
    lo0, hi0 = -1.02, 1.02   # cosine range with slack for rounding

    coarse_edges = jnp.linspace(lo0, hi0, _COARSE_BINS, dtype=jnp.float32)
    coarse_counts = _count_leq(sim_mat, coarse_edges.reshape(1, -1),
                               tr, tc, vmem_limit)

    ranks = [q * (m - 1) for q in qs]     # 0-based fractional ranks (static)
    fine_edges_list = []
    for r in ranks:
        k0 = int(r)
        t_lo = jnp.int32(min(k0 + 1, m))
        t_hi = jnp.int32(min(k0 + 2, m))
        i_lo = jnp.clip(jnp.searchsorted(coarse_counts, t_lo), 1, _COARSE_BINS - 1)
        i_hi = jnp.clip(jnp.searchsorted(coarse_counts, t_hi), 1, _COARSE_BINS - 1)
        lo = coarse_edges[i_lo - 1]
        hi = coarse_edges[i_hi]
        fine_edges_list.append(jnp.linspace(lo, hi, _FINE_BINS, dtype=jnp.float32))
    fine_edges = jnp.concatenate(fine_edges_list).reshape(1, -1)
    fine_counts = _count_leq(sim_mat, fine_edges, tr, tc, vmem_limit)

    out = []
    for qi, r in enumerate(ranks):
        e = fine_edges[0, qi * _FINE_BINS:(qi + 1) * _FINE_BINS]
        c = fine_counts[qi * _FINE_BINS:(qi + 1) * _FINE_BINS]
        k0 = int(r)
        f = jnp.float32(r - k0)
        s_k = _order_stat_from_counts(e, c, jnp.int32(min(k0 + 1, m)))
        s_k1 = _order_stat_from_counts(e, c, jnp.int32(min(k0 + 2, m)))
        out.append((1.0 - f) * s_k + f * s_k1)
    return out


# ---------------------------------------------------------------------------
# Pass 3: lane-dense threshold new_adj = where(sim > quant_top, sim, 0)
# ---------------------------------------------------------------------------
def _thresh_kernel(q_ref, s_ref, o_ref):
    q = q_ref[...]                       # (1, 1), broadcasts against the tile
    s = s_ref[...]
    o_ref[...] = jnp.where(s > q, s, jnp.zeros_like(s))


# ---------------------------------------------------------------------------
# Wrapper reproducing Rewire.forward
# ---------------------------------------------------------------------------
def rewire_forward(similarity, adjacency, ratio, *, use_bf16_mxu=True):
    """Pallas implementation of Rewire(ratio).forward(similarity, adjacency).

    `adjacency` is accepted for API fidelity but (as in the PyTorch module)
    does not affect the output.  `use_bf16_mxu=True` (default) is a precision
    mode: the MXU consumes bf16 operands with f32 accumulation (~1e-3 relative
    error on the cosines); pass False for a pure-f32 path.  Quantiles are
    computed by a two-level counting histogram (error ~1e-4), not an exact
    global sort.  `ratio` must be a static Python float.
    """
    del adjacency  # unused by the reference forward pass
    bot_q = 0.1
    top_q = 1.0 - ratio

    n = similarity.shape[0]
    assert similarity.shape == (n, n), "Rewire requires a square similarity matrix"

    # Pass-2 tiles: bf16 inputs + f32-resident output keep the per-step
    # working set ~14 MiB - safe for v7x's 64 MiB VMEM, big enough to be
    # MXU-bound on v5e/v6e as well.
    tm = _pick_tile(n, 1024, 128)
    tn = tm
    tk = _pick_tile(n, 512, 128)
    vmem_limit = 48 * 1024 * 1024

    x = similarity.astype(jnp.bfloat16) if use_bf16_mxu else similarity

    sim_mat = pl.pallas_call(
        _gram_kernel,
        out_shape=jax.ShapeDtypeStruct((n, n), jnp.float32),
        grid_spec=pltpu.PrefetchScalarGridSpec(
            num_scalar_prefetch=0,
            grid=(n // tm, n // tn, n // tk),
            in_specs=[
                pl.BlockSpec((tm, tk), lambda i, j, k: (i, k)),   # X rows
                pl.BlockSpec((tn, tk), lambda i, j, k: (j, k)),   # X cols
            ],
            out_specs=pl.BlockSpec((tm, tn), lambda i, j, k: (i, j)),
            scratch_shapes=[pltpu.VMEM((tm, 1), jnp.float32),
                            pltpu.VMEM((1, tn), jnp.float32)]),
        compiler_params=pltpu.CompilerParams(
            dimension_semantics=("parallel", "parallel", "arbitrary"),
            vmem_limit_bytes=vmem_limit),
    )(x, x)

    # Quantiles via two fixed-range counting passes (no N^2 sort).
    ctr = _pick_tile(n, 256, 8)
    ctc = _pick_tile(n, 512, 128)
    quant_bot, quant_top = _approx_quantiles(
        sim_mat, (bot_q, top_q), ctr, ctc, vmem_limit)

    # Pass 3: tiled, lane-dense threshold.
    tr = _pick_tile(n, 512, 8)
    tc = _pick_tile(n, 1024, 128)
    new_adj = pl.pallas_call(
        _thresh_kernel,
        out_shape=jax.ShapeDtypeStruct((n, n), jnp.float32),
        grid_spec=pltpu.PrefetchScalarGridSpec(
            num_scalar_prefetch=0,
            grid=(n // tr, n // tc),
            in_specs=[
                pl.BlockSpec((1, 1), lambda i, j: (0, 0)),
                pl.BlockSpec((tr, tc), lambda i, j: (i, j)),
            ],
            out_specs=pl.BlockSpec((tr, tc), lambda i, j: (i, j))),
        compiler_params=pltpu.CompilerParams(
            dimension_semantics=("parallel", "parallel"),
            vmem_limit_bytes=vmem_limit),
    )(quant_top.reshape(1, 1).astype(jnp.float32), sim_mat)

    return new_adj, quant_bot, quant_top


if __name__ == "__main__":
    key = jax.random.PRNGKey(0)
    k_sim, k_adj = jax.random.split(key)

    N = 128  # number of nodes (square similarity matrix)
    ratio = 0.2

    similarity = jax.random.normal(k_sim, (N, N), dtype=jnp.float32)
    adjacency = (jax.random.uniform(k_adj, (N, N)) > 0.5).astype(jnp.float32)

    new_adj, quant_bot, quant_top = rewire_forward(similarity, adjacency, ratio)
    new_adj = jax.block_until_ready(new_adj)
    jax.block_until_ready(quant_bot)
    jax.block_until_ready(quant_top)

    # Pure-JAX reference of the same math.
    xn = similarity / jnp.maximum(
        jnp.sqrt(jnp.sum(similarity * similarity, axis=1, keepdims=True)), 1e-12)
    sim_ref = (xn @ xn.T) * (1.0 - jnp.eye(N, dtype=jnp.float32))
    qb_ref = jnp.quantile(sim_ref.reshape(-1), 0.1)
    qt_ref = jnp.quantile(sim_ref.reshape(-1), 1.0 - ratio)
    ref = jnp.where(sim_ref > qt_ref, sim_ref, 0.0)

    # Tolerances cover the bf16 MXU precision mode and the histogram-quantile
    # approximation; entries within float noise of the threshold may flip.
    tol = 5e-3
    assert jnp.allclose(quant_top, qt_ref, atol=tol), "top quantile mismatch"
    assert jnp.allclose(quant_bot, qb_ref, atol=tol), "bottom quantile mismatch"
    elementwise_ok = jnp.isclose(new_adj, ref, rtol=1e-2, atol=tol)
    near_threshold = jnp.abs(sim_ref - qt_ref) < tol
    assert bool(jnp.all(elementwise_ok | near_threshold)), "mismatch vs reference"
    assert bool(jnp.all(jnp.diag(new_adj) == 0.0)), "diagonal not zeroed"

    print("KERNEL_OK")
</pallas_src>

<mosaic_0001>
module attributes {stable_mosaic.version = 11 : i64} {
  func.func @_gram_kernel(%arg0: i32, %arg1: i32, %arg2: i32, %arg3: memref<128x128xbf16, #tpu.memory_space<vmem>>, %arg4: memref<128x128xbf16, #tpu.memory_space<vmem>>, %arg5: memref<128x128xf32, #tpu.memory_space<vmem>>, %arg6: memref<128x1xf32, #tpu.memory_space<vmem>>, %arg7: memref<1x128xf32, #tpu.memory_space<vmem>>) attributes {dimension_semantics = [#tpu.dimension_semantics<parallel>, #tpu.dimension_semantics<parallel>, #tpu.dimension_semantics<arbitrary>], iteration_bounds = array<i64: 1, 1, 1>, scalar_prefetch = 0 : i64, scratch_operands = 2 : i64, tpu.core_type = #tpu.core_type<tc>, window_params = [{transform_indices = @transform_0, window_bounds = array<i64: 128, 128>}, {transform_indices = @transform_1, window_bounds = array<i64: 128, 128>}, {transform_indices = @transform_2, window_bounds = array<i64: 128, 128>}]} {
    %c0_i32 = arith.constant 0 : i32
    %0 = arith.cmpi eq, %arg2, %c0_i32 : i32
    %1 = arith.extui %0 : i1 to i32
    %c0_i32_0 = arith.constant 0 : i32
    %2 = arith.cmpi ne, %1, %c0_i32_0 : i32
    scf.if %2 {
      %cst_21 = arith.constant 0.000000e+00 : f32
      %26 = vector.broadcast %cst_21 : f32 to vector<128x128xf32>
      %c0_22 = arith.constant 0 : index
      %c0_23 = arith.constant 0 : index
      %27 = vector.load %arg5[%c0_22, %c0_23] : memref<128x128xf32, #tpu.memory_space<vmem>>, vector<128x128xf32>
      tpu.vector_store %arg5[%c0_22, %c0_23], %26 {strides = array<i32>} : memref<128x128xf32, #tpu.memory_space<vmem>>, vector<128x128xf32>,
      %cst_24 = arith.constant 0.000000e+00 : f32
      %28 = vector.broadcast %cst_24 : f32 to vector<128x1xf32>
      %c0_25 = arith.constant 0 : index
      %c0_26 = arith.constant 0 : index
      %29 = vector.load %arg6[%c0_25, %c0_26] : memref<128x1xf32, #tpu.memory_space<vmem>>, vector<128x1xf32>
      tpu.vector_store %arg6[%c0_25, %c0_26], %28 {strides = array<i32>} : memref<128x1xf32, #tpu.memory_space<vmem>>, vector<128x1xf32>,
      %cst_27 = arith.constant 0.000000e+00 : f32
      %30 = vector.broadcast %cst_27 : f32 to vector<1x128xf32>
      %c0_28 = arith.constant 0 : index
      %c0_29 = arith.constant 0 : index
      %31 = vector.load %arg7[%c0_28, %c0_29] : memref<1x128xf32, #tpu.memory_space<vmem>>, vector<1x128xf32>
      tpu.vector_store %arg7[%c0_28, %c0_29], %30 {strides = array<i32>} : memref<1x128xf32, #tpu.memory_space<vmem>>, vector<1x128xf32>,
    } else {
    }
    %c0 = arith.constant 0 : index
    %c0_1 = arith.constant 0 : index
    %3 = vector.load %arg3[%c0, %c0_1] : memref<128x128xbf16, #tpu.memory_space<vmem>>, vector<128x128xbf16>
    %c0_2 = arith.constant 0 : index
    %c0_3 = arith.constant 0 : index
    %4 = vector.load %arg4[%c0_2, %c0_3] : memref<128x128xbf16, #tpu.memory_space<vmem>>, vector<128x128xbf16>
    %c0_4 = arith.constant 0 : index
    %c0_5 = arith.constant 0 : index
    %5 = vector.load %arg5[%c0_4, %c0_5] : memref<128x128xf32, #tpu.memory_space<vmem>>, vector<128x128xf32>
    %cst = arith.constant dense<0.000000e+00> : vector<128x128xf32>
    %6 = tpu.matmul %3, %4, %cst {dimension_numbers = #tpu.dot_dimension_numbers<[1], [1], [0], [0], [0, 0, 1, 0], [], []>} : vector<128x128xbf16>, vector<128x128xbf16>, vector<128x128xf32> -> vector<128x128xf32>
    %7 = arith.addf %5, %6 : vector<128x128xf32>
    %c0_6 = arith.constant 0 : index
    %c0_7 = arith.constant 0 : index
    %8 = vector.load %arg5[%c0_6, %c0_7] : memref<128x128xf32, #tpu.memory_space<vmem>>, vector<128x128xf32>
    tpu.vector_store %arg5[%c0_6, %c0_7], %7 {strides = array<i32>} : memref<128x128xf32, #tpu.memory_space<vmem>>, vector<128x128xf32>,
    %9 = arith.extf %3 : vector<128x128xbf16> to vector<128x128xf32>
    %10 = arith.extf %4 : vector<128x128xbf16> to vector<128x128xf32>
    %c0_8 = arith.constant 0 : index
    %c0_9 = arith.constant 0 : index
    %11 = vector.load %arg6[%c0_8, %c0_9] : memref<128x1xf32, #tpu.memory_space<vmem>>, vector<128x1xf32>
    %12 = arith.mulf %9, %9 : vector<128x128xf32>
    %cst_10 = arith.constant dense<0.000000e+00> : vector<128xf32>
    %13 = vector.multi_reduction <add>, %12, %cst_10 [1] : vector<128x128xf32> to vector<128xf32>
    %14 = vector.shape_cast %13 : vector<128xf32> to vector<128x1xf32>
    %15 = arith.addf %11, %14 : vector<128x1xf32>
    %c0_11 = arith.constant 0 : index
    %c0_12 = arith.constant 0 : index
    %16 = vector.load %arg6[%c0_11, %c0_12] : memref<128x1xf32, #tpu.memory_space<vmem>>, vector<128x1xf32>
    tpu.vector_store %arg6[%c0_11, %c0_12], %15 {strides = array<i32>} : memref<128x1xf32, #tpu.memory_space<vmem>>, vector<128x1xf32>,
    %cst_13 = arith.constant 1.000000e+00 : f32
    %17 = vector.broadcast %cst_13 : f32 to vector<1x128xf32>
    %c0_14 = arith.constant 0 : index
    %c0_15 = arith.constant 0 : index
    %18 = vector.load %arg7[%c0_14, %c0_15] : memref<1x128xf32, #tpu.memory_space<vmem>>, vector<1x128xf32>
    %19 = arith.mulf %10, %10 : vector<128x128xf32>
    %cst_16 = arith.constant dense<0.000000e+00> : vector<1x128xf32>
    %20 = tpu.matmul %17, %19, %cst_16 {dimension_numbers = #tpu.dot_dimension_numbers<[1], [1], [0], [0], [0, 0, 1, 0], [], []>} : vector<1x128xf32>, vector<128x128xf32>, vector<1x128xf32> -> vector<1x128xf32>
    %21 = arith.addf %18, %20 : vector<1x128xf32>
    %c0_17 = arith.constant 0 : index
    %c0_18 = arith.constant 0 : index
    %22 = vector.load %arg7[%c0_17, %c0_18] : memref<1x128xf32, #tpu.memory_space<vmem>>, vector<1x128xf32>
    tpu.vector_store %arg7[%c0_17, %c0_18], %21 {strides = array<i32>} : memref<1x128xf32, #tpu.memory_space<vmem>>, vector<1x128xf32>,
    %c0_i32_19 = arith.constant 0 : i32
    %23 = arith.cmpi eq, %arg2, %c0_i32_19 : i32
    %24 = arith.extui %23 : i1 to i32
    %c0_i32_20 = arith.constant 0 : i32
    %25 = arith.cmpi ne, %24, %c0_i32_20 : i32
    scf.if %25 {
      %c0_21 = arith.constant 0 : index
      %c0_22 = arith.constant 0 : index
      %26 = vector.load %arg6[%c0_21, %c0_22] : memref<128x1xf32, #tpu.memory_space<vmem>>, vector<128x1xf32>
      %cst_23 = arith.constant 1.000000e-24 : f32
      %27 = vector.broadcast %cst_23 : f32 to vector<128x1xf32>
      %28 = arith.maximumf %26, %27 : vector<128x1xf32>
      %29 = math.rsqrt %28 : vector<128x1xf32>
      %c0_24 = arith.constant 0 : index
      %c0_25 = arith.constant 0 : index
      %30 = vector.load %arg7[%c0_24, %c0_25] : memref<1x128xf32, #tpu.memory_space<vmem>>, vector<1x128xf32>
      %cst_26 = arith.constant 1.000000e-24 : f32
      %31 = vector.broadcast %cst_26 : f32 to vector<1x128xf32>
      %32 = arith.maximumf %30, %31 : vector<1x128xf32>
      %33 = math.rsqrt %32 : vector<1x128xf32>
      %c0_27 = arith.constant 0 : index
      %c0_28 = arith.constant 0 : index
      %34 = vector.load %arg5[%c0_27, %c0_28] : memref<128x128xf32, #tpu.memory_space<vmem>>, vector<128x128xf32>
      %35 = vector.broadcast %29 : vector<128x1xf32> to vector<128x128xf32>
      %36 = arith.mulf %34, %35 : vector<128x128xf32>
      %37 = vector.broadcast %33 : vector<1x128xf32> to vector<128x128xf32>
      %38 = arith.mulf %36, %37 : vector<128x128xf32>
      %c128_i32 = arith.constant 128 : i32
      %39 = arith.muli %arg0, %c128_i32 : i32
      %40 = tpu.iota {dimensions = array<i32: 0>} : vector<128x128xi32>
      %41 = vector.broadcast %39 : i32 to vector<128x128xi32>
      %42 = arith.addi %41, %40 : vector<128x128xi32>
      %c128_i32_29 = arith.constant 128 : i32
      %43 = arith.muli %arg1, %c128_i32_29 : i32
      %44 = tpu.iota {dimensions = array<i32: 1>} : vector<128x128xi32>
      %45 = vector.broadcast %43 : i32 to vector<128x128xi32>
      %46 = arith.addi %45, %44 : vector<128x128xi32>
      %47 = arith.cmpi eq, %42, %46 : vector<128x128xi32>
      %cst_30 = arith.constant 0.000000e+00 : f32
      %48 = vector.broadcast %cst_30 : f32 to vector<128x128xf32>
      %49 = arith.select %47, %48, %38 : vector<128x128xi1>, vector<128x128xf32>
      %c0_31 = arith.constant 0 : index
      %c0_32 = arith.constant 0 : index
      %50 = vector.load %arg5[%c0_31, %c0_32] : memref<128x128xf32, #tpu.memory_space<vmem>>, vector<128x128xf32>
      tpu.vector_store %arg5[%c0_31, %c0_32], %49 {strides = array<i32>} : memref<128x128xf32, #tpu.memory_space<vmem>>, vector<128x128xf32>,
    } else {
    }
    return
  }
  func.func @transform_0(%arg0: i32, %arg1: i32, %arg2: i32) -> (i32, i32) {
    %c0_i32 = arith.constant 0 : i32
    return %arg0, %arg2 : i32, i32
  }
  func.func @transform_1(%arg0: i32, %arg1: i32, %arg2: i32) -> (i32, i32) {
    %c0_i32 = arith.constant 0 : i32
    return %arg1, %arg2 : i32, i32
  }
  func.func @transform_2(%arg0: i32, %arg1: i32, %arg2: i32) -> (i32, i32) {
    %c0_i32 = arith.constant 0 : i32
    return %arg0, %arg1 : i32, i32
  }
}

</mosaic_0001>

<llo_original>
// kernel: tpu_custom_call.1
$region0: #{tpu_custom_call.1}
  #allocation0 [shape = 'u32[]', space=smem, size = 0x4, offset = 0x4, fixed_abs, tag = 'smem constant byte address 0x4 - core index']
  #allocation1 [shape = 'u32[144,128]{1,0:T(1,128)}', space=vmem, size = 0x12000, scoped, tag = 'internal scratch']
  #allocation2 [shape = 'f32[128,1]{1,0:T(8,128)}', space=vmem, size = 0x10000, scoped, tag = 'scratch operand']
  #allocation3 [shape = 'f32[1,128]{1,0:T(1,128)}', space=vmem, size = 0x200, scoped, tag = 'scratch operand']
  %s0 = inlined_call_operand.hbm [shape: bf16[128,128], index: 0, kind: input, shape index: {}]
  %s1 = inlined_call_operand.hbm [shape: bf16[128,128], index: 1, kind: input, shape index: {}]
  %s2 = inlined_call_operand.hbm [shape: f32[128,128], index: 2, kind: output, shape index: {}]
  %s3 = sld [smem:[#allocation0]]
  $region34: #{tpu_custom_call.1} parent=0
    _
  %s5 = ssub.s32 1, %s3
  %s6 = scalar_select 0, %s5, %s3
  $region1: #{tpu_custom_call.1} parent=0
    #allocation4 [shape = 'u8[32768]{0}', space=vmem, size = 0x8000, scoped, tag = 'input window, operand 0, single buffered']
    #allocation5 [shape = 's32[1]{0}', space=sflag, size = 0x4, scoped, tag = 'scoped memory for tpu_custom_call.1']
    #allocation6 [shape = 's32[1]{0}', space=sflag, size = 0x4, scoped, tag = 'scoped memory for tpu_custom_call.1']
    #allocation7 [shape = 'u8[32768]{0}', space=vmem, size = 0x8000, scoped, tag = 'input window, operand 1, single buffered']
    #allocation8 [shape = 's32[1]{0}', space=sflag, size = 0x4, scoped, tag = 'scoped memory for tpu_custom_call.1']
    #allocation9 [shape = 'u8[65536]{0}', space=vmem, size = 0x10000, scoped, tag = 'output window, operand 0, single buffered']
    %7 = vsyncpa [#allocation5], 0
    %8 = vsyncpa [#allocation8], 0
    %9 = vsyncpa [#allocation6], 0
    // Predicated region
    $region2: #{tpu_custom_call.1} parent=1 // pred_check
      _
    $region3: #{tpu_custom_call.1} parent=1 // pred_check_branch
      %11 = sbr.rel (0) target = $region5
    $region4: #{tpu_custom_call.1} parent=1 // pred_region
      %s13 = ssub.s32 1024, 1024
      %14 = vsyncadd [#allocation5], %s13
      %s15 = sshll.u32 [#allocation4], 4
      %s16 = int_to_ptr.vmem [resolvable:$true] %s15
      %21 = dma.hbm_to_vmem [thread:$0]  %s0, 1024, %s16, [#allocation5], 64, 64, 4
    $region5: #{tpu_custom_call.1} parent=1 // pred_fallthru
      _
    // Predicated region
    $region6: #{tpu_custom_call.1} parent=1 // pred_check
      _
    $region7: #{tpu_custom_call.1} parent=1 // pred_check_branch
      %23 = sbr.rel (0) target = $region9
    $region8: #{tpu_custom_call.1} parent=1 // pred_region
      %s25 = ssub.s32 1024, 1024
      %26 = vsyncadd [#allocation8], %s25
      %s27 = sshll.u32 [#allocation7], 4
      %s28 = int_to_ptr.vmem [resolvable:$true] %s27
      %33 = dma.hbm_to_vmem [thread:$0]  %s1, 1024, %s28, [#allocation8], 64, 64, 4
    $region9: #{tpu_custom_call.1} parent=1 // pred_fallthru
      _
    // Predicated region
    $region10: #{tpu_custom_call.1} parent=1 // pred_check
      _
    $region11: #{tpu_custom_call.1} parent=1 // pred_check_branch
      %35 = sbr.rel (0) target = $region13
    $region12: #{tpu_custom_call.1} parent=1 // pred_region
      %36 = dma.done [#allocation5], 1024
    $region13: #{tpu_custom_call.1} parent=1 // pred_fallthru
      _
    // Predicated region
    $region14: #{tpu_custom_call.1} parent=1 // pred_check
      _
    $region15: #{tpu_custom_call.1} parent=1 // pred_check_branch
      %38 = sbr.rel (0) target = $region17
    $region16: #{tpu_custom_call.1} parent=1 // pred_region
      %39 = dma.done [#allocation8], 1024
    $region17: #{tpu_custom_call.1} parent=1 // pred_fallthru
      _
    %p41 = scmp.eq.s32.totalorder 0, 0
    // Predicated region
    $region18: #{tpu_custom_call.1} parent=1 // pred_check
      %p42 = pneg %p41
    $region19: #{tpu_custom_call.1} parent=1 // pred_check_branch
      %44 = sbr.rel (%p42) target = $region21
    $region20: #{tpu_custom_call.1} parent=1 // pred_region
      %45 = vst [vmem:[#allocation9] sm:$0xff] 0.0
      %46 = vst [vmem:[#allocation9 + $0x8] sm:$0xff] 0.0
      %47 = vst [vmem:[#allocation9 + $0x10] sm:$0xff] 0.0
      %48 = vst [vmem:[#allocation9 + $0x18] sm:$0xff] 0.0
      %49 = vst [vmem:[#allocation9 + $0x20] sm:$0xff] 0.0
      %50 = vst [vmem:[#allocation9 + $0x28] sm:$0xff] 0.0
      %51 = vst [vmem:[#allocation9 + $0x30] sm:$0xff] 0.0
      %52 = vst [vmem:[#allocation9 + $0x38] sm:$0xff] 0.0
      %53 = vst [vmem:[#allocation9 + $0x40] sm:$0xff] 0.0
      %54 = vst [vmem:[#allocation9 + $0x48] sm:$0xff] 0.0
      %55 = vst [vmem:[#allocation9 + $0x50] sm:$0xff] 0.0
      %56 = vst [vmem:[#allocation9 + $0x58] sm:$0xff] 0.0
      %57 = vst [vmem:[#allocation9 + $0x60] sm:$0xff] 0.0
      %58 = vst [vmem:[#allocation9 + $0x68] sm:$0xff] 0.0
      %59 = vst [vmem:[#allocation9 + $0x70] sm:$0xff] 0.0
      %60 = vst [vmem:[#allocation9 + $0x78] sm:$0xff] 0.0
      %vm61 = vcmask 7168
      %62 = vst.msk [vmem:[#allocation2] sm:$0xff] %vm61, 0.0
      %63 = vst.msk [vmem:[#allocation2 + $0x8] sm:$0xff] %vm61, 0.0
      %64 = vst.msk [vmem:[#allocation2 + $0x10] sm:$0xff] %vm61, 0.0
      %65 = vst.msk [vmem:[#allocation2 + $0x18] sm:$0xff] %vm61, 0.0
      %66 = vst.msk [vmem:[#allocation2 + $0x20] sm:$0xff] %vm61, 0.0
      %67 = vst.msk [vmem:[#allocation2 + $0x28] sm:$0xff] %vm61, 0.0
      %68 = vst.msk [vmem:[#allocation2 + $0x30] sm:$0xff] %vm61, 0.0
      %69 = vst.msk [vmem:[#allocation2 + $0x38] sm:$0xff] %vm61, 0.0
      %70 = vst.msk [vmem:[#allocation2 + $0x40] sm:$0xff] %vm61, 0.0
      %71 = vst.msk [vmem:[#allocation2 + $0x48] sm:$0xff] %vm61, 0.0
      %72 = vst.msk [vmem:[#allocation2 + $0x50] sm:$0xff] %vm61, 0.0
      %73 = vst.msk [vmem:[#allocation2 + $0x58] sm:$0xff] %vm61, 0.0
      %74 = vst.msk [vmem:[#allocation2 + $0x60] sm:$0xff] %vm61, 0.0
      %75 = vst.msk [vmem:[#allocation2 + $0x68] sm:$0xff] %vm61, 0.0
      %76 = vst.msk [vmem:[#allocation2 + $0x70] sm:$0xff] %vm61, 0.0
      %77 = vst.msk [vmem:[#allocation2 + $0x78] sm:$0xff] %vm61, 0.0
      %78 = vst [vmem:[#allocation3] sm:$0x1] 0.0
    $region21: #{tpu_custom_call.1} parent=1 // pred_fallthru
      _
    %v79 = vld [vmem:[#allocation4] sm:$0xf]
    %v80 = vld [vmem:[#allocation4 + $0x4] sm:$0xf]
    %v81 = vld [vmem:[#allocation4 + $0x8] sm:$0xf]
    %v82 = vld [vmem:[#allocation4 + $0xc] sm:$0xf]
    %v83 = vld [vmem:[#allocation4 + $0x10] sm:$0xf]
    %v84 = vld [vmem:[#allocation4 + $0x14] sm:$0xf]
    %v85 = vld [vmem:[#allocation4 + $0x18] sm:$0xf]
    %v86 = vld [vmem:[#allocation4 + $0x1c] sm:$0xf]
    %v87 = vld [vmem:[#allocation4 + $0x20] sm:$0xf]
    %v88 = vld [vmem:[#allocation4 + $0x24] sm:$0xf]
    %v89 = vld [vmem:[#allocation4 + $0x28] sm:$0xf]
    %v90 = vld [vmem:[#allocation4 + $0x2c] sm:$0xf]
    %v91 = vld [vmem:[#allocation4 + $0x30] sm:$0xf]
    %v92 = vld [vmem:[#allocation4 + $0x34] sm:$0xf]
    %v93 = vld [vmem:[#allocation4 + $0x38] sm:$0xf]
    %v94 = vld [vmem:[#allocation4 + $0x3c] sm:$0xf]
    %v95 = vld [vmem:[#allocation7] sm:$0xf]
    %v96 = vld [vmem:[#allocation7 + $0x4] sm:$0xf]
    %v97 = vld [vmem:[#allocation7 + $0x8] sm:$0xf]
    %v98 = vld [vmem:[#allocation7 + $0xc] sm:$0xf]
    %v99 = vld [vmem:[#allocation7 + $0x10] sm:$0xf]
    %v100 = vld [vmem:[#allocation7 + $0x14] sm:$0xf]
    %v101 = vld [vmem:[#allocation7 + $0x18] sm:$0xf]
    %v102 = vld [vmem:[#allocation7 + $0x1c] sm:$0xf]
    %v103 = vld [vmem:[#allocation7 + $0x20] sm:$0xf]
    %v104 = vld [vmem:[#allocation7 + $0x24] sm:$0xf]
    %v105 = vld [vmem:[#allocation7 + $0x28] sm:$0xf]
    %v106 = vld [vmem:[#allocation7 + $0x2c] sm:$0xf]
    %v107 = vld [vmem:[#allocation7 + $0x30] sm:$0xf]
    %v108 = vld [vmem:[#allocation7 + $0x34] sm:$0xf]
    %v109 = vld [vmem:[#allocation7 + $0x38] sm:$0xf]
    %v110 = vld [vmem:[#allocation7 + $0x3c] sm:$0xf]
    %v111 = vld [vmem:[#allocation9] sm:$0xff]
    %v112 = vld [vmem:[#allocation9 + $0x8] sm:$0xff]
    %v113 = vld [vmem:[#allocation9 + $0x10] sm:$0xff]
    %v114 = vld [vmem:[#allocation9 + $0x18] sm:$0xff]
    %v115 = vld [vmem:[#allocation9 + $0x20] sm:$0xff]
    %v116 = vld [vmem:[#allocation9 + $0x28] sm:$0xff]
    %v117 = vld [vmem:[#allocation9 + $0x30] sm:$0xff]
    %v118 = vld [vmem:[#allocation9 + $0x38] sm:$0xff]
    %v119 = vld [vmem:[#allocation9 + $0x40] sm:$0xff]
    %v120 = vld [vmem:[#allocation9 + $0x48] sm:$0xff]
    %v121 = vld [vmem:[#allocation9 + $0x50] sm:$0xff]
    %v122 = vld [vmem:[#allocation9 + $0x58] sm:$0xff]
    %v123 = vld [vmem:[#allocation9 + $0x60] sm:$0xff]
    %v124 = vld [vmem:[#allocation9 + $0x68] sm:$0xff]
    %v125 = vld [vmem:[#allocation9 + $0x70] sm:$0xff]
    %v126 = vld [vmem:[#allocation9 + $0x78] sm:$0xff]
    %v143 = vunpack.c.l.b16 %v79
    %v144 = vunpack.c.l.b16 %v80
    %v145 = vunpack.c.l.b16 %v81
    %v146 = vunpack.c.l.b16 %v82
    %v147 = vunpack.c.l.b16 %v83
    %v148 = vunpack.c.l.b16 %v84
    %v149 = vunpack.c.l.b16 %v85
    %v150 = vunpack.c.l.b16 %v86
    %v151 = vunpack.c.l.b16 %v87
    %v152 = vunpack.c.l.b16 %v88
    %v153 = vunpack.c.l.b16 %v89
    %v154 = vunpack.c.l.b16 %v90
    %v155 = vunpack.c.l.b16 %v91
    %v156 = vunpack.c.l.b16 %v92
    %v157 = vunpack.c.l.b16 %v93
    %v158 = vunpack.c.l.b16 %v94
    %v159 = vpack.c.b16 %v144, %v143
    %v160 = vpack.c.b16 %v146, %v145
    %v161 = vpack.c.b16 %v148, %v147
    %v162 = vpack.c.b16 %v150, %v149
    %v163 = vpack.c.b16 %v152, %v151
    %v164 = vpack.c.b16 %v154, %v153
    %v165 = vpack.c.b16 %v156, %v155
    %v166 = vpack.c.b16 %v158, %v157
    %v191 = vunpack.c.l.b16 %v95
    %v192 = vunpack.c.l.b16 %v96
    %v193 = vunpack.c.l.b16 %v97
    %v194 = vunpack.c.l.b16 %v98
    %v195 = vunpack.c.l.b16 %v99
    %v196 = vunpack.c.l.b16 %v100
    %v197 = vunpack.c.l.b16 %v101
    %v198 = vunpack.c.l.b16 %v102
    %v199 = vunpack.c.l.b16 %v103
    %v200 = vunpack.c.l.b16 %v104
    %v201 = vunpack.c.l.b16 %v105
    %v202 = vunpack.c.l.b16 %v106
    %v203 = vunpack.c.l.b16 %v107
    %v204 = vunpack.c.l.b16 %v108
    %v205 = vunpack.c.l.b16 %v109
    %v206 = vunpack.c.l.b16 %v110
    %v207 = vpack.c.b16 %v192, %v191
    %v208 = vpack.c.b16 %v194, %v193
    %v209 = vpack.c.b16 %v196, %v195
    %v210 = vpack.c.b16 %v198, %v197
    %v211 = vpack.c.b16 %v200, %v199
    %v212 = vpack.c.b16 %v202, %v201
    %v213 = vpack.c.b16 %v204, %v203
    %v214 = vpack.c.b16 %v206, %v205
    %223 = vmatprep.subr.bf16.mxu0 0
    %224 = vmatpush1.bf16.xpose.msra.mxu0 %v207
    %225 = vmatprep.subr.bf16.mxu0 0
    %226 = vmatpush1.bf16.xpose.msra.mxu0 %v208
    %227 = vmatprep.subr.bf16.mxu0 0
    %228 = vmatpush1.bf16.xpose.msra.mxu0 %v209
    %229 = vmatprep.subr.bf16.mxu0 0
    %230 = vmatpush1.bf16.xpose.msra.mxu0 %v210
    %231 = vmatprep.subr.bf16.mxu0 0
    %232 = vmatpush1.bf16.xpose.msra.mxu0 %v211
    %233 = vmatprep.subr.bf16.mxu0 0
    %234 = vmatpush1.bf16.xpose.msra.mxu0 %v212
    %235 = vmatprep.subr.bf16.mxu0 0
    %236 = vmatpush1.bf16.xpose.msra.mxu0 %v213
    %237 = vmatprep.subr.bf16.mxu0 0
    %238 = vmatpush1.bf16.xpose.msra.mxu0 %v214
    %239 = vmatprep.subr.bf16.mxu0 0
    %240 = vmatpush1.bf16.xpose.msra.mxu0 0
    %241 = vmatprep.subr.bf16.mxu0 0
    %242 = vmatpush1.bf16.xpose.msra.mxu0 0
    %243 = vmatprep.subr.bf16.mxu0 0
    %244 = vmatpush1.bf16.xpose.msra.mxu0 0
    %245 = vmatprep.subr.bf16.mxu0 0
    %246 = vmatpush1.bf16.xpose.msra.mxu0 0
    %247 = vmatprep.subr.bf16.mxu0 0
    %248 = vmatpush1.bf16.xpose.msra.mxu0 0
    %249 = vmatprep.subr.bf16.mxu0 0
    %250 = vmatpush1.bf16.xpose.msra.mxu0 0
    %251 = vmatprep.subr.bf16.mxu0 0
    %252 = vmatpush1.bf16.xpose.msra.mxu0 0
    %253 = vmatprep.subr.bf16.mxu0 0
    %254 = vmatpush1.bf16.xpose.msra.mxu0 0
    %255 = vmatprep.mubr.bf16.mxu0 0
    %256 = vmatmul.mubr.bf16.gmra.mrb[0].mxu0 %v159
    %v257 = vpop.f32.mrb[0].mxu0
    %v258 = vadd.f32 0.0, %v257
    %v259 = vpop.f32.mrb[0].mxu0
    %v260 = vpop.f32.mrb[0].mxu0
    %v261 = vadd.f32 0.0, %v260
    %v262 = vpop.f32.mrb[0].mxu0
    %263 = vmatprep.mubr.bf16.mxu0 0
    %264 = vmatmul.mubr.bf16.gmra.mrb[0].mxu0 %v160
    %v265 = vpop.f32.mrb[0].mxu0
    %v266 = vadd.f32 0.0, %v265
    %v267 = vpop.f32.mrb[0].mxu0
    %v268 = vpop.f32.mrb[0].mxu0
    %v269 = vadd.f32 0.0, %v268
    %v270 = vpop.f32.mrb[0].mxu0
    %271 = vmatprep.mubr.bf16.mxu0 0
    %272 = vmatmul.mubr.bf16.gmra.mrb[0].mxu0 %v161
    %v273 = vpop.f32.mrb[0].mxu0
    %v274 = vadd.f32 0.0, %v273
    %v275 = vpop.f32.mrb[0].mxu0
    %v276 = vpop.f32.mrb[0].mxu0
    %v277 = vadd.f32 0.0, %v276
    %v278 = vpop.f32.mrb[0].mxu0
    %279 = vmatprep.mubr.bf16.mxu0 0
    %280 = vmatmul.mubr.bf16.gmra.mrb[0].mxu0 %v162
    %v281 = vpop.f32.mrb[0].mxu0
    %v282 = vadd.f32 0.0, %v281
    %v283 = vpop.f32.mrb[0].mxu0
    %v284 = vpop.f32.mrb[0].mxu0
    %v285 = vadd.f32 0.0, %v284
    %v286 = vpop.f32.mrb[0].mxu0
    %287 = vmatprep.mubr.bf16.mxu0 0
    %288 = vmatmul.mubr.bf16.gmra.mrb[0].mxu0 %v163
    %v289 = vpop.f32.mrb[0].mxu0
    %v290 = vadd.f32 0.0, %v289
    %v291 = vpop.f32.mrb[0].mxu0
    %v292 = vpop.f32.mrb[0].mxu0
    %v293 = vadd.f32 0.0, %v292
    %v294 = vpop.f32.mrb[0].mxu0
    %295 = vmatprep.mubr.bf16.mxu0 0
    %296 = vmatmul.mubr.bf16.gmra.mrb[0].mxu0 %v164
    %v297 = vpop.f32.mrb[0].mxu0
    %v298 = vadd.f32 0.0, %v297
    %v299 = vpop.f32.mrb[0].mxu0
    %v300 = vpop.f32.mrb[0].mxu0
    %v301 = vadd.f32 0.0, %v300
    %v302 = vpop.f32.mrb[0].mxu0
    %303 = vmatprep.mubr.bf16.mxu0 0
    %304 = vmatmul.mubr.bf16.gmra.mrb[0].mxu0 %v165
    %v305 = vpop.f32.mrb[0].mxu0
    %v306 = vadd.f32 0.0, %v305
    %v307 = vpop.f32.mrb[0].mxu0
    %v308 = vpop.f32.mrb[0].mxu0
    %v309 = vadd.f32 0.0, %v308
    %v310 = vpop.f32.mrb[0].mxu0
    %311 = vmatprep.mubr.bf16.mxu0 0
    %312 = vmatmul.mubr.bf16.gmra.mrb[0].mxu0 %v166
    %v313 = vpop.f32.mrb[0].mxu0
    %v314 = vadd.f32 0.0, %v313
    %v315 = vpop.f32.mrb[0].mxu0
    %v316 = vpop.f32.mrb[0].mxu0
    %v317 = vadd.f32 0.0, %v316
    %v318 = vpop.f32.mrb[0].mxu0
    %319 = vdwg.mxu0
    %v320 = vadd.f32 %v111, %v258
    %v321 = vadd.f32 %v112, %v261
    %v322 = vadd.f32 %v113, %v266
    %v323 = vadd.f32 %v114, %v269
    %v324 = vadd.f32 %v115, %v274
    %v325 = vadd.f32 %v116, %v277
    %v326 = vadd.f32 %v117, %v282
    %v327 = vadd.f32 %v118, %v285
    %v328 = vadd.f32 %v119, %v290
    %v329 = vadd.f32 %v120, %v293
    %v330 = vadd.f32 %v121, %v298
    %v331 = vadd.f32 %v122, %v301
    %v332 = vadd.f32 %v123, %v306
    %v333 = vadd.f32 %v124, %v309
    %v334 = vadd.f32 %v125, %v314
    %v335 = vadd.f32 %v126, %v317
    %336 = vst [vmem:[#allocation9] sm:$0xff] %v320
    %337 = vst [vmem:[#allocation9 + $0x8] sm:$0xff] %v321
    %338 = vst [vmem:[#allocation9 + $0x10] sm:$0xff] %v322
    %339 = vst [vmem:[#allocation9 + $0x18] sm:$0xff] %v323
    %340 = vst [vmem:[#allocation9 + $0x20] sm:$0xff] %v324
    %341 = vst [vmem:[#allocation9 + $0x28] sm:$0xff] %v325
    %342 = vst [vmem:[#allocation9 + $0x30] sm:$0xff] %v326
    %343 = vst [vmem:[#allocation9 + $0x38] sm:$0xff] %v327
    %344 = vst [vmem:[#allocation9 + $0x40] sm:$0xff] %v328
    %345 = vst [vmem:[#allocation9 + $0x48] sm:$0xff] %v329
    %346 = vst [vmem:[#allocation9 + $0x50] sm:$0xff] %v330
    %347 = vst [vmem:[#allocation9 + $0x58] sm:$0xff] %v331
    %348 = vst [vmem:[#allocation9 + $0x60] sm:$0xff] %v332
    %349 = vst [vmem:[#allocation9 + $0x68] sm:$0xff] %v333
    %350 = vst [vmem:[#allocation9 + $0x70] sm:$0xff] %v334
    %351 = vst [vmem:[#allocation9 + $0x78] sm:$0xff] %v335
    %v352 = vunpack.c.l.bf16 %v79
    %v353 = vunpack.c.l.bf16 %v80
    %v354 = vunpack.c.l.bf16 %v81
    %v355 = vunpack.c.l.bf16 %v82
    %v356 = vunpack.c.l.bf16 %v83
    %v357 = vunpack.c.l.bf16 %v84
    %v358 = vunpack.c.l.bf16 %v85
    %v359 = vunpack.c.l.bf16 %v86
    %v360 = vunpack.c.l.bf16 %v87
    %v361 = vunpack.c.l.bf16 %v88
    %v362 = vunpack.c.l.bf16 %v89
    %v363 = vunpack.c.l.bf16 %v90
    %v364 = vunpack.c.l.bf16 %v91
    %v365 = vunpack.c.l.bf16 %v92
    %v366 = vunpack.c.l.bf16 %v93
    %v367 = vunpack.c.l.bf16 %v94
    %v368 = vunpack.c.l.bf16 %v95
    %v369 = vunpack.c.l.bf16 %v96
    %v370 = vunpack.c.l.bf16 %v97
    %v371 = vunpack.c.l.bf16 %v98
    %v372 = vunpack.c.l.bf16 %v99
    %v373 = vunpack.c.l.bf16 %v100
    %v374 = vunpack.c.l.bf16 %v101
    %v375 = vunpack.c.l.bf16 %v102
    %v376 = vunpack.c.l.bf16 %v103
    %v377 = vunpack.c.l.bf16 %v104
    %v378 = vunpack.c.l.bf16 %v105
    %v379 = vunpack.c.l.bf16 %v106
    %v380 = vunpack.c.l.bf16 %v107
    %v381 = vunpack.c.l.bf16 %v108
    %v382 = vunpack.c.l.bf16 %v109
    %v383 = vunpack.c.l.bf16 %v110
    %v384 = vld [vmem:[#allocation2] sm:$0xff]
    %v385 = vld [vmem:[#allocation2 + $0x8] sm:$0xff]
    %v386 = vld [vmem:[#allocation2 + $0x10] sm:$0xff]
    %v387 = vld [vmem:[#allocation2 + $0x18] sm:$0xff]
    %v388 = vld [vmem:[#allocation2 + $0x20] sm:$0xff]
    %v389 = vld [vmem:[#allocation2 + $0x28] sm:$0xff]
    %v390 = vld [vmem:[#allocation2 + $0x30] sm:$0xff]
    %v391 = vld [vmem:[#allocation2 + $0x38] sm:$0xff]
    %v392 = vld [vmem:[#allocation2 + $0x40] sm:$0xff]
    %v393 = vld [vmem:[#allocation2 + $0x48] sm:$0xff]
    %v394 = vld [vmem:[#allocation2 + $0x50] sm:$0xff]
    %v395 = vld [vmem:[#allocation2 + $0x58] sm:$0xff]
    %v396 = vld [vmem:[#allocation2 + $0x60] sm:$0xff]
    %v397 = vld [vmem:[#allocation2 + $0x68] sm:$0xff]
    %v398 = vld [vmem:[#allocation2 + $0x70] sm:$0xff]
    %v399 = vld [vmem:[#allocation2 + $0x78] sm:$0xff]
    %v400 = vmul.f32 %v352, %v352
    %v401 = vmul.f32 %v353, %v353
    %v402 = vmul.f32 %v354, %v354
    %v403 = vmul.f32 %v355, %v355
    %v404 = vmul.f32 %v356, %v356
    %v405 = vmul.f32 %v357, %v357
    %v406 = vmul.f32 %v358, %v358
    %v407 = vmul.f32 %v359, %v359
    %v408 = vmul.f32 %v360, %v360
    %v409 = vmul.f32 %v361, %v361
    %v410 = vmul.f32 %v362, %v362
    %v411 = vmul.f32 %v363, %v363
    %v412 = vmul.f32 %v364, %v364
    %v413 = vmul.f32 %v365, %v365
    %v414 = vmul.f32 %v366, %v366
    %v415 = vmul.f32 %v367, %v367
    %416 = vadd.xlane.f32.xlu0 %v400
    %v417 = vpop.xlane.xlu0 %416
    %418 = vadd.xlane.f32.xlu0 %v401
    %v419 = vpop.xlane.xlu0 %418
    %420 = vadd.xlane.f32.xlu0 %v402
    %v421 = vpop.xlane.xlu0 %420
    %422 = vadd.xlane.f32.xlu0 %v403
    %v423 = vpop.xlane.xlu0 %422
    %424 = vadd.xlane.f32.xlu0 %v404
    %v425 = vpop.xlane.xlu0 %424
    %426 = vadd.xlane.f32.xlu0 %v405
    %v427 = vpop.xlane.xlu0 %426
    %428 = vadd.xlane.f32.xlu0 %v406
    %v429 = vpop.xlane.xlu0 %428
    %430 = vadd.xlane.f32.xlu0 %v407
    %v431 = vpop.xlane.xlu0 %430
    %432 = vadd.xlane.f32.xlu0 %v408
    %v433 = vpop.xlane.xlu0 %432
    %434 = vadd.xlane.f32.xlu0 %v409
    %v435 = vpop.xlane.xlu0 %434
    %436 = vadd.xlane.f32.xlu0 %v410
    %v437 = vpop.xlane.xlu0 %436
    %438 = vadd.xlane.f32.xlu0 %v411
    %v439 = vpop.xlane.xlu0 %438
    %440 = vadd.xlane.f32.xlu0 %v412
    %v441 = vpop.xlane.xlu0 %440
    %442 = vadd.xlane.f32.xlu0 %v413
    %v443 = vpop.xlane.xlu0 %442
    %444 = vadd.xlane.f32.xlu0 %v414
    %v445 = vpop.xlane.xlu0 %444
    %446 = vadd.xlane.f32.xlu0 %v415
    %v447 = vpop.xlane.xlu0 %446
    %v448 = vadd.f32 %v384, %v417
    %v449 = vadd.f32 %v385, %v419
    %v450 = vadd.f32 %v386, %v421
    %v451 = vadd.f32 %v387, %v423
    %v452 = vadd.f32 %v388, %v425
    %v453 = vadd.f32 %v389, %v427
    %v454 = vadd.f32 %v390, %v429
    %v455 = vadd.f32 %v391, %v431
    %v456 = vadd.f32 %v392, %v433
    %v457 = vadd.f32 %v393, %v435
    %v458 = vadd.f32 %v394, %v437
    %v459 = vadd.f32 %v395, %v439
    %v460 = vadd.f32 %v396, %v441
    %v461 = vadd.f32 %v397, %v443
    %v462 = vadd.f32 %v398, %v445
    %v463 = vadd.f32 %v399, %v447
    %vm464 = vcmask 7168
    %465 = vst.msk [vmem:[#allocation2] sm:$0xff] %vm464, %v448
    %466 = vst.msk [vmem:[#allocation2 + $0x8] sm:$0xff] %vm464, %v449
    %467 = vst.msk [vmem:[#allocation2 + $0x10] sm:$0xff] %vm464, %v450
    %468 = vst.msk [vmem:[#allocation2 + $0x18] sm:$0xff] %vm464, %v451
    %469 = vst.msk [vmem:[#allocation2 + $0x20] sm:$0xff] %vm464, %v452
    %470 = vst.msk [vmem:[#allocation2 + $0x28] sm:$0xff] %vm464, %v453
    %471 = vst.msk [vmem:[#allocation2 + $0x30] sm:$0xff] %vm464, %v454
    %472 = vst.msk [vmem:[#allocation2 + $0x38] sm:$0xff] %vm464, %v455
    %473 = vst.msk [vmem:[#allocation2 + $0x40] sm:$0xff] %vm464, %v456
    %474 = vst.msk [vmem:[#allocation2 + $0x48] sm:$0xff] %vm464, %v457
    %475 = vst.msk [vmem:[#allocation2 + $0x50] sm:$0xff] %vm464, %v458
    %476 = vst.msk [vmem:[#allocation2 + $0x58] sm:$0xff] %vm464, %v459
    %477 = vst.msk [vmem:[#allocation2 + $0x60] sm:$0xff] %vm464, %v460
    %478 = vst.msk [vmem:[#allocation2 + $0x68] sm:$0xff] %vm464, %v461
    %479 = vst.msk [vmem:[#allocation2 + $0x70] sm:$0xff] %vm464, %v462
    %480 = vst.msk [vmem:[#allocation2 + $0x78] sm:$0xff] %vm464, %v463
    %v481 = vld [vmem:[#allocation3] sm:$0x1]
    %v482 = vmul.f32 %v368, %v368
    %v483 = vmul.f32 %v369, %v369
    %v484 = vmul.f32 %v370, %v370
    %v485 = vmul.f32 %v371, %v371
    %v486 = vmul.f32 %v372, %v372
    %v487 = vmul.f32 %v373, %v373
    %v488 = vmul.f32 %v374, %v374
    %v489 = vmul.f32 %v375, %v375
    %v490 = vmul.f32 %v376, %v376
    %v491 = vmul.f32 %v377, %v377
    %v492 = vmul.f32 %v378, %v378
    %v493 = vmul.f32 %v379, %v379
    %v494 = vmul.f32 %v380, %v380
    %v495 = vmul.f32 %v381, %v381
    %v496 = vmul.f32 %v382, %v382
    %v497 = vmul.f32 %v383, %v383
    %498 = vmatprep.subr.mxu0 0.0
    %499 = vmatpush1.xpose.msra.mxu0 %v482
    %500 = vmatprep.subr.mxu0 0.0
    %501 = vmatpush1.xpose.msra.mxu0 %v483
    %502 = vmatprep.subr.mxu0 0.0
    %503 = vmatpush1.xpose.msra.mxu0 %v484
    %504 = vmatprep.subr.mxu0 0.0
    %505 = vmatpush1.xpose.msra.mxu0 %v485
    %506 = vmatprep.subr.mxu0 0.0
    %507 = vmatpush1.xpose.msra.mxu0 %v486
    %508 = vmatprep.subr.mxu0 0.0
    %509 = vmatpush1.xpose.msra.mxu0 %v487
    %510 = vmatprep.subr.mxu0 0.0
    %511 = vmatpush1.xpose.msra.mxu0 %v488
    %512 = vmatprep.subr.mxu0 0.0
    %513 = vmatpush1.xpose.msra.mxu0 %v489
    %514 = vmatprep.subr.mxu0 0.0
    %515 = vmatpush1.xpose.msra.mxu0 %v490
    %516 = vmatprep.subr.mxu0 0.0
    %517 = vmatpush1.xpose.msra.mxu0 %v491
    %518 = vmatprep.subr.mxu0 0.0
    %519 = vmatpush1.xpose.msra.mxu0 %v492
    %520 = vmatprep.subr.mxu0 0.0
    %521 = vmatpush1.xpose.msra.mxu0 %v493
    %522 = vmatprep.subr.mxu0 0.0
    %523 = vmatpush1.xpose.msra.mxu0 %v494
    %524 = vmatprep.subr.mxu0 0.0
    %525 = vmatpush1.xpose.msra.mxu0 %v495
    %526 = vmatprep.subr.mxu0 0.0
    %527 = vmatpush1.xpose.msra.mxu0 %v496
    %528 = vmatprep.subr.mxu0 0.0
    %529 = vmatpush1.xpose.msra.mxu0 %v497
    %530 = vmatprep.subr.mxu0 0.0
    %531 = vmatpush1.xpose.msra.mxu0 0.0
    %532 = vmatprep.subr.mxu0 0.0
    %533 = vmatpush1.xpose.msra.mxu0 0.0
    %534 = vmatprep.subr.mxu0 0.0
    %535 = vmatpush1.xpose.msra.mxu0 0.0
    %536 = vmatprep.subr.mxu0 0.0
    %537 = vmatpush1.xpose.msra.mxu0 0.0
    %538 = vmatprep.subr.mxu0 0.0
    %539 = vmatpush1.xpose.msra.mxu0 0.0
    %540 = vmatprep.subr.mxu0 0.0
    %541 = vmatpush1.xpose.msra.mxu0 0.0
    %542 = vmatprep.subr.mxu0 0.0
    %543 = vmatpush1.xpose.msra.mxu0 0.0
    %544 = vmatprep.subr.mxu0 0.0
    %545 = vmatpush1.xpose.msra.mxu0 0.0
    %546 = vmatprep.subr.mxu0 0.0
    %547 = vmatpush1.xpose.msra.mxu0 0.0
    %548 = vmatprep.subr.mxu0 0.0
    %549 = vmatpush1.xpose.msra.mxu0 0.0
    %550 = vmatprep.subr.mxu0 0.0
    %551 = vmatpush1.xpose.msra.mxu0 0.0
    %552 = vmatprep.subr.mxu0 0.0
    %553 = vmatpush1.xpose.msra.mxu0 0.0
    %554 = vmatprep.subr.mxu0 0.0
    %555 = vmatpush1.xpose.msra.mxu0 0.0
    %556 = vmatprep.subr.mxu0 0.0
    %557 = vmatpush1.xpose.msra.mxu0 0.0
    %558 = vmatprep.subr.mxu0 0.0
    %559 = vmatpush1.xpose.msra.mxu0 0.0
    %560 = vmatprep.subr.mxu0 0.0
    %561 = vmatpush1.xpose.msra.mxu0 0.0
    %562 = vmatprep.mubr.f32.mxu0 0.0
    %563 = vmatmul.mubr.f32.gmra.mrb[0].mxu0 1.0
    %v564 = vpop.f32.mrb[0].mxu0
    %v565 = vadd.f32 0.0, %v564
    %v566 = vpop.f32.mrb[0].mxu0
    %567 = vdwg.mxu0
    %v568 = vadd.f32 %v481, %v565
    %569 = vst [vmem:[#allocation3] sm:$0x1] %v568
    // Predicated region
    $region22: #{tpu_custom_call.1} parent=1 // pred_check
      %p570 = pneg %p41
    $region23: #{tpu_custom_call.1} parent=1 // pred_check_branch
      %572 = sbr.rel (%p570) target = $region25
    $region24: #{tpu_custom_call.1} parent=1 // pred_region
      %v573 = vld [vmem:[#allocation2] sm:$0xff]
      %v574 = vld [vmem:[#allocation2 + $0x8] sm:$0xff]
      %v575 = vld [vmem:[#allocation2 + $0x10] sm:$0xff]
      %v576 = vld [vmem:[#allocation2 + $0x18] sm:$0xff]
      %v577 = vld [vmem:[#allocation2 + $0x20] sm:$0xff]
      %v578 = vld [vmem:[#allocation2 + $0x28] sm:$0xff]
      %v579 = vld [vmem:[#allocation2 + $0x30] sm:$0xff]
      %v580 = vld [vmem:[#allocation2 + $0x38] sm:$0xff]
      %v581 = vld [vmem:[#allocation2 + $0x40] sm:$0xff]
      %v582 = vld [vmem:[#allocation2 + $0x48] sm:$0xff]
      %v583 = vld [vmem:[#allocation2 + $0x50] sm:$0xff]
      %v584 = vld [vmem:[#allocation2 + $0x58] sm:$0xff]
      %v585 = vld [vmem:[#allocation2 + $0x60] sm:$0xff]
      %v586 = vld [vmem:[#allocation2 + $0x68] sm:$0xff]
      %v587 = vld [vmem:[#allocation2 + $0x70] sm:$0xff]
      %v588 = vld [vmem:[#allocation2 + $0x78] sm:$0xff]
      %v589 = vmax.f32 %v573, 1e-24
      %v590 = vmax.f32 %v574, 1e-24
      %v591 = vmax.f32 %v575, 1e-24
      %v592 = vmax.f32 %v576, 1e-24
      %v593 = vmax.f32 %v577, 1e-24
      %v594 = vmax.f32 %v578, 1e-24
      %v595 = vmax.f32 %v579, 1e-24
      %v596 = vmax.f32 %v580, 1e-24
      %v597 = vmax.f32 %v581, 1e-24
      %v598 = vmax.f32 %v582, 1e-24
      %v599 = vmax.f32 %v583, 1e-24
      %v600 = vmax.f32 %v584, 1e-24
      %v601 = vmax.f32 %v585, 1e-24
      %v602 = vmax.f32 %v586, 1e-24
      %v603 = vmax.f32 %v587, 1e-24
      %v604 = vmax.f32 %v588, 1e-24
      %v605 = vrsqrt.pop %v589
      %v606 = vrsqrt.pop %v590
      %v607 = vrsqrt.pop %v591
      %v608 = vrsqrt.pop %v592
      %v609 = vrsqrt.pop %v593
      %v610 = vrsqrt.pop %v594
      %v611 = vrsqrt.pop %v595
      %v612 = vrsqrt.pop %v596
      %v613 = vrsqrt.pop %v597
      %v614 = vrsqrt.pop %v598
      %v615 = vrsqrt.pop %v599
      %v616 = vrsqrt.pop %v600
      %v617 = vrsqrt.pop %v601
      %v618 = vrsqrt.pop %v602
      %v619 = vrsqrt.pop %v603
      %v620 = vrsqrt.pop %v604
      %v621 = vld [vmem:[#allocation3] sm:$0x1]
      %v622 = vmax.f32 %v621, 1e-24
      %v623 = vrsqrt.pop %v622
      %v624 = vld [vmem:[#allocation9] sm:$0xff]
      %v625 = vld [vmem:[#allocation9 + $0x8] sm:$0xff]
      %v626 = vld [vmem:[#allocation9 + $0x10] sm:$0xff]
      %v627 = vld [vmem:[#allocation9 + $0x18] sm:$0xff]
      %v628 = vld [vmem:[#allocation9 + $0x20] sm:$0xff]
      %v629 = vld [vmem:[#allocation9 + $0x28] sm:$0xff]
      %v630 = vld [vmem:[#allocation9 + $0x30] sm:$0xff]
      %v631 = vld [vmem:[#allocation9 + $0x38] sm:$0xff]
      %v632 = vld [vmem:[#allocation9 + $0x40] sm:$0xff]
      %v633 = vld [vmem:[#allocation9 + $0x48] sm:$0xff]
      %v634 = vld [vmem:[#allocation9 + $0x50] sm:$0xff]
      %v635 = vld [vmem:[#allocation9 + $0x58] sm:$0xff]
      %v636 = vld [vmem:[#allocation9 + $0x60] sm:$0xff]
      %v637 = vld [vmem:[#allocation9 + $0x68] sm:$0xff]
      %v638 = vld [vmem:[#allocation9 + $0x70] sm:$0xff]
      %v639 = vld [vmem:[#allocation9 + $0x78] sm:$0xff]
      %641 = vset.pattern.permute.xlu0 0
      %642 = vperm.xlu0 %641, %v605
      %v643 = vpop.permute.xlu0 %642
      %646 = vset.pattern.permute.xlu0 0
      %647 = vperm.xlu0 %646, %v606
      %v648 = vpop.permute.xlu0 %647
      %651 = vset.pattern.permute.xlu0 0
      %652 = vperm.xlu0 %651, %v607
      %v653 = vpop.permute.xlu0 %652
      %656 = vset.pattern.permute.xlu0 0
      %657 = vperm.xlu0 %656, %v608
      %v658 = vpop.permute.xlu0 %657
      %661 = vset.pattern.permute.xlu0 0
      %662 = vperm.xlu0 %661, %v609
      %v663 = vpop.permute.xlu0 %662
      %666 = vset.pattern.permute.xlu0 0
      %667 = vperm.xlu0 %666, %v610
      %v668 = vpop.permute.xlu0 %667
      %671 = vset.pattern.permute.xlu0 0
      %672 = vperm.xlu0 %671, %v611
      %v673 = vpop.permute.xlu0 %672
      %676 = vset.pattern.permute.xlu0 0
      %677 = vperm.xlu0 %676, %v612
      %v678 = vpop.permute.xlu0 %677
      %681 = vset.pattern.permute.xlu0 0
      %682 = vperm.xlu0 %681, %v613
      %v683 = vpop.permute.xlu0 %682
      %686 = vset.pattern.permute.xlu0 0
      %687 = vperm.xlu0 %686, %v614
      %v688 = vpop.permute.xlu0 %687
      %691 = vset.pattern.permute.xlu0 0
      %692 = vperm.xlu0 %691, %v615
      %v693 = vpop.permute.xlu0 %692
      %696 = vset.pattern.permute.xlu0 0
      %697 = vperm.xlu0 %696, %v616
      %v698 = vpop.permute.xlu0 %697
      %701 = vset.pattern.permute.xlu0 0
      %702 = vperm.xlu0 %701, %v617
      %v703 = vpop.permute.xlu0 %702
      %706 = vset.pattern.permute.xlu0 0
      %707 = vperm.xlu0 %706, %v618
      %v708 = vpop.permute.xlu0 %707
      %711 = vset.pattern.permute.xlu0 0
      %712 = vperm.xlu0 %711, %v619
      %v713 = vpop.permute.xlu0 %712
      %716 = vset.pattern.permute.xlu0 0
      %717 = vperm.xlu0 %716, %v620
      %v718 = vpop.permute.xlu0 %717
      %v720 = vmul.f32 %v624, %v643
      %v721 = vmul.f32 %v625, %v648
      %v722 = vmul.f32 %v626, %v653
      %v723 = vmul.f32 %v627, %v658
      %v724 = vmul.f32 %v628, %v663
      %v725 = vmul.f32 %v629, %v668
      %v726 = vmul.f32 %v630, %v673
      %v727 = vmul.f32 %v631, %v678
      %v728 = vmul.f32 %v632, %v683
      %v729 = vmul.f32 %v633, %v688
      %v730 = vmul.f32 %v634, %v693
      %v731 = vmul.f32 %v635, %v698
      %v732 = vmul.f32 %v636, %v703
      %v733 = vmul.f32 %v637, %v708
      %v734 = vmul.f32 %v638, %v713
      %v735 = vmul.f32 %v639, %v718
      %v737 = vlaneseq
      %v738 = vshrl.u32 %v737, 7
      %v739 = vsub.s32 0, %v738
      %v740 = vrot.slane %v623, %v739
      %v742 = vmul.f32 %v720, %v740
      %v743 = vmul.f32 %v721, %v740
      %v744 = vmul.f32 %v722, %v740
      %v745 = vmul.f32 %v723, %v740
      %v746 = vmul.f32 %v724, %v740
      %v747 = vmul.f32 %v725, %v740
      %v748 = vmul.f32 %v726, %v740
      %v749 = vmul.f32 %v727, %v740
      %v750 = vmul.f32 %v728, %v740
      %v751 = vmul.f32 %v729, %v740
      %v752 = vmul.f32 %v730, %v740
      %v753 = vmul.f32 %v731, %v740
      %v754 = vmul.f32 %v732, %v740
      %v755 = vmul.f32 %v733, %v740
      %v756 = vmul.f32 %v734, %v740
      %v757 = vmul.f32 %v735, %v740
      %s758 = smul.u32 0, 128
      %v759 = vlaneseq
      %v760 = vshrl.u32 %v759, 7
      %v761 = vadd.s32 %v760, 8
      %v762 = vadd.s32 %v760, 16
      %v763 = vadd.s32 %v760, 24
      %v764 = vadd.s32 %v760, 32
      %v765 = vadd.s32 %v760, 40
      %v766 = vadd.s32 %v760, 48
      %v767 = vadd.s32 %v760, 56
      %v768 = vadd.s32 %v760, 64
      %v769 = vadd.s32 %v760, 72
      %v770 = vadd.s32 %v760, 80
      %v771 = vadd.s32 %v760, 88
      %v772 = vadd.s32 %v760, 96
      %v773 = vadd.s32 %v760, 104
      %v774 = vadd.s32 %v760, 112
      %v775 = vadd.s32 %v760, 120
      %v776 = vstv %s758
      %v777 = vadd.s32 %v776, %v760
      %v778 = vadd.s32 %v776, %v761
      %v779 = vadd.s32 %v776, %v762
      %v780 = vadd.s32 %v776, %v763
      %v781 = vadd.s32 %v776, %v764
      %v782 = vadd.s32 %v776, %v765
      %v783 = vadd.s32 %v776, %v766
      %v784 = vadd.s32 %v776, %v767
      %v785 = vadd.s32 %v776, %v768
      %v786 = vadd.s32 %v776, %v769
      %v787 = vadd.s32 %v776, %v770
      %v788 = vadd.s32 %v776, %v771
      %v789 = vadd.s32 %v776, %v772
      %v790 = vadd.s32 %v776, %v773
      %v791 = vadd.s32 %v776, %v774
      %v792 = vadd.s32 %v776, %v775
      %s793 = smul.u32 0, 128
      %v794 = vlaneseq
      %v795 = vand.u32 %v794, 127
      %v796 = vstv %s793
      %v797 = vadd.s32 %v796, %v795
      %vm798 = vcmp.eq.s32.totalorder %v777, %v797
      %vm799 = vcmp.eq.s32.totalorder %v778, %v797
      %vm800 = vcmp.eq.s32.totalorder %v779, %v797
      %vm801 = vcmp.eq.s32.totalorder %v780, %v797
      %vm802 = vcmp.eq.s32.totalorder %v781, %v797
      %vm803 = vcmp.eq.s32.totalorder %v782, %v797
      %vm804 = vcmp.eq.s32.totalorder %v783, %v797
      %vm805 = vcmp.eq.s32.totalorder %v784, %v797
      %vm806 = vcmp.eq.s32.totalorder %v785, %v797
      %vm807 = vcmp.eq.s32.totalorder %v786, %v797
      %vm808 = vcmp.eq.s32.totalorder %v787, %v797
      %vm809 = vcmp.eq.s32.totalorder %v788, %v797
      %vm810 = vcmp.eq.s32.totalorder %v789, %v797
      %vm811 = vcmp.eq.s32.totalorder %v790, %v797
      %vm812 = vcmp.eq.s32.totalorder %v791, %v797
      %vm813 = vcmp.eq.s32.totalorder %v792, %v797
      %v814 = vsel %vm798, 0.0, %v742
      %v815 = vsel %vm799, 0.0, %v743
      %v816 = vsel %vm800, 0.0, %v744
      %v817 = vsel %vm801, 0.0, %v745
      %v818 = vsel %vm802, 0.0, %v746
      %v819 = vsel %vm803, 0.0, %v747
      %v820 = vsel %vm804, 0.0, %v748
      %v821 = vsel %vm805, 0.0, %v749
      %v822 = vsel %vm806, 0.0, %v750
      %v823 = vsel %vm807, 0.0, %v751
      %v824 = vsel %vm808, 0.0, %v752
      %v825 = vsel %vm809, 0.0, %v753
      %v826 = vsel %vm810, 0.0, %v754
      %v827 = vsel %vm811, 0.0, %v755
      %v828 = vsel %vm812, 0.0, %v756
      %v829 = vsel %vm813, 0.0, %v757
      %830 = vst [vmem:[#allocation9] sm:$0xff] %v814
      %831 = vst [vmem:[#allocation9 + $0x8] sm:$0xff] %v815
      %832 = vst [vmem:[#allocation9 + $0x10] sm:$0xff] %v816
      %833 = vst [vmem:[#allocation9 + $0x18] sm:$0xff] %v817
      %834 = vst [vmem:[#allocation9 + $0x20] sm:$0xff] %v818
      %835 = vst [vmem:[#allocation9 + $0x28] sm:$0xff] %v819
      %836 = vst [vmem:[#allocation9 + $0x30] sm:$0xff] %v820
      %837 = vst [vmem:[#allocation9 + $0x38] sm:$0xff] %v821
      %838 = vst [vmem:[#allocation9 + $0x40] sm:$0xff] %v822
      %839 = vst [vmem:[#allocation9 + $0x48] sm:$0xff] %v823
      %840 = vst [vmem:[#allocation9 + $0x50] sm:$0xff] %v824
      %841 = vst [vmem:[#allocation9 + $0x58] sm:$0xff] %v825
      %842 = vst [vmem:[#allocation9 + $0x60] sm:$0xff] %v826
      %843 = vst [vmem:[#allocation9 + $0x68] sm:$0xff] %v827
      %844 = vst [vmem:[#allocation9 + $0x70] sm:$0xff] %v828
      %845 = vst [vmem:[#allocation9 + $0x78] sm:$0xff] %v829
    $region25: #{tpu_custom_call.1} parent=1 // pred_fallthru
      _
    // Predicated region
    $region26: #{tpu_custom_call.1} parent=1 // pred_check
      _
    $region27: #{tpu_custom_call.1} parent=1 // pred_check_branch
      %847 = sbr.rel (0) target = $region29
    $region28: #{tpu_custom_call.1} parent=1 // pred_region
      %s849 = ssub.s32 2048, 2048
      %850 = vsyncadd [#allocation6], %s849
      %s851 = sshll.u32 [#allocation9], 4
      %s852 = int_to_ptr.vmem [resolvable:$true] %s851
      %857 = dma.vmem_to_hbm [thread:$0]  %s852, 2048, %s2, [#allocation6], 128, 128, 8
    $region29: #{tpu_custom_call.1} parent=1 // pred_fallthru
      _
    // Predicated region
    $region30: #{tpu_custom_call.1} parent=1 // pred_check
      _
    $region31: #{tpu_custom_call.1} parent=1 // pred_check_branch
      %859 = sbr.rel (0) target = $region33
    $region32: #{tpu_custom_call.1} parent=1 // pred_region
      %860 = dma.done [#allocation6], 2048
    $region33: #{tpu_custom_call.1} parent=1 // pred_fallthru
      _
    %861 = vsyncpa [#allocation5], 1
    %862 = vsyncpa [#allocation8], 1
    %863 = vsyncpa [#allocation6], 1

</llo_original>
